<compile_context>
chip_gen: v5e
topology: v5e:2x2
jax: 0.10.0
libtpu: 0.0.40
codegen_flags: <defaults>
</compile_context>

<pallas_src>
import math
import functools

import jax
import jax.numpy as jnp
from jax.experimental import pallas as pl
from jax.experimental.pallas import tpu as pltpu


# --------------------------------------------------------------------------
# PE buffer construction (plain JAX glue, mirrors the PyTorch __init__)
# --------------------------------------------------------------------------
def make_positional_encoding(d_model: int, max_len: int) -> jnp.ndarray:
    """Build the (max_len, 1, d_model) sinusoidal PE buffer (even d_model)."""
    position = jnp.arange(max_len, dtype=jnp.float32)[:, None]            # (L, 1)
    div_term = jnp.exp(
        jnp.arange(0, d_model, 2, dtype=jnp.float32)
        * (-math.log(10000.0) / d_model)
    )                                                                     # (D/2,)
    pe = jnp.zeros((max_len, d_model), dtype=jnp.float32)
    pe = pe.at[:, 0::2].set(jnp.sin(position * div_term))
    pe = pe.at[:, 1::2].set(jnp.cos(position * div_term))
    return pe[:, None, :]                                                 # (L, 1, D)


# --------------------------------------------------------------------------
# In-kernel counter-based PRNG (portable: uses only 32-bit jnp ops)
# --------------------------------------------------------------------------
def _hash_u32(v):
    """lowbias32-style integer hash on uint32 arrays (wrapping arithmetic)."""
    v = v ^ (v >> 16)
    v = v * jnp.uint32(0x7FEB352D)
    v = v ^ (v >> 15)
    v = v * jnp.uint32(0x846CA68B)
    v = v ^ (v >> 16)
    return v


def _apply_dropout(y, idx_u32, seed_u32, p):
    """Inverted dropout keyed by (seed, global element index)."""
    h = _hash_u32(idx_u32 ^ (seed_u32 * jnp.uint32(0x9E3779B1)))
    h = _hash_u32(h + jnp.uint32(0x85EBCA6B))
    # Top 23 bits -> uniform in [0, 1) via exact int32 -> float32 convert.
    r = (h >> 9).astype(jnp.int32)
    u = r.astype(jnp.float32) * jnp.float32(1.0 / (1 << 23))
    keep = u >= jnp.float32(p)
    scale = jnp.asarray(1.0 / (1.0 - p), dtype=y.dtype)
    return jnp.where(keep, y * scale, jnp.zeros_like(y))


# --------------------------------------------------------------------------
# Kernels
# --------------------------------------------------------------------------
def _pe_dropout_kernel_2d(seed_ref, x_ref, pe_ref, o_ref, *, p: float,
                          training: bool, pe_reps: int):
    # x_ref, o_ref : (ts, L) VMEM tiles, L = B*D (lane-dense layout).
    # pe_ref       : (ts, L) when pe_reps == 1 (pre-broadcast) or (ts, D) when
    #                pe_reps == B (replicated in-kernel via aligned lane concat).
    pe_t = pe_ref[...]
    if pe_reps > 1:
        pe_t = jnp.concatenate([pe_t] * pe_reps, axis=1)      # (ts, B*D)
    y = x_ref[...] + pe_t

    if training and p >= 1.0:
        o_ref[...] = jnp.zeros_like(o_ref)
        return

    if training and p > 0.0:
        ts, L = x_ref.shape
        s0 = pl.program_id(0) * ts
        ri = (jax.lax.broadcasted_iota(jnp.int32, (ts, L), 0) + s0).astype(jnp.uint32)
        ci = jax.lax.broadcasted_iota(jnp.int32, (ts, L), 1).astype(jnp.uint32)
        idx = ri * jnp.uint32(L) + ci
        y = _apply_dropout(y, idx, seed_ref[0].astype(jnp.uint32), p)

    o_ref[...] = y.astype(o_ref.dtype)


def _pe_dropout_kernel_3d(seed_ref, x_ref, pe_ref, o_ref, *, p: float,
                          training: bool, full_b: int):
    # x_ref : (ts, bb, D), pe_ref : (ts, 1, D) -> broadcasts over batch axis.
    y = x_ref[...] + pe_ref[...]

    if training and p >= 1.0:
        o_ref[...] = jnp.zeros_like(o_ref)
        return

    if training and p > 0.0:
        ts, bb, d = x_ref.shape
        s0 = pl.program_id(0) * ts
        b0 = pl.program_id(1) * bb
        si = (jax.lax.broadcasted_iota(jnp.int32, (ts, bb, d), 0) + s0).astype(jnp.uint32)
        bi = (jax.lax.broadcasted_iota(jnp.int32, (ts, bb, d), 1) + b0).astype(jnp.uint32)
        di = jax.lax.broadcasted_iota(jnp.int32, (ts, bb, d), 2).astype(jnp.uint32)
        idx = (si * jnp.uint32(full_b) + bi) * jnp.uint32(d) + di
        y = _apply_dropout(y, idx, seed_ref[0].astype(jnp.uint32), p)

    o_ref[...] = y.astype(o_ref.dtype)


# --------------------------------------------------------------------------
# Wrapper
# --------------------------------------------------------------------------
_TARGET_TILE_BYTES = 2 * 1024 * 1024   # ~2 MiB x-tile; ~85% HBM roofline regime
_MAX_INKERNEL_PE_REPS = 32             # unrolled lane-concat limit


def _pick_rows(n: int, row_bytes: int, target_bytes: int = _TARGET_TILE_BYTES,
               align: int = 8) -> int:
    """Largest row count fitting target_bytes: either full extent or a multiple of 8."""
    rows = max(1, target_bytes // max(row_bytes, 1))
    if rows >= n:
        return int(n)
    rows = max(align, (rows // align) * align)
    return int(min(rows, n))


def positional_encoding_forward(
    x: jnp.ndarray,          # (S, B, D)
    pe: jnp.ndarray,         # (max_len, 1, D)
    *,
    dropout_p: float = 0.1,
    training: bool = True,
    seed: int = 0,
) -> jnp.ndarray:
    S, B, D = x.shape
    assert pe.shape[0] >= S and pe.shape[-1] == D
    p = float(dropout_p)
    itemsize = jnp.dtype(x.dtype).itemsize
    seed_arr = jnp.asarray([seed], dtype=jnp.int32)
    pe_s = pe[:S].astype(x.dtype)                   # cast once; halves pe DMA for bf16 x

    aligned = (D % 128 == 0)
    cparams = pltpu.CompilerParams(vmem_limit_bytes=32 * 1024 * 1024)

    if aligned and B >= 8:
        # ---- General aligned 3-D path: pe tile (ts, 1, D) broadcasts over batch
        # in-kernel, so pe HBM traffic stays ~x_traffic / B; stores are full-lane.
        row_bytes = B * D * itemsize
        if row_bytes <= _TARGET_TILE_BYTES:
            bb = B
            ts = _pick_rows(S, row_bytes)
        else:
            ts = min(S, 8)
            bb = _pick_rows(B, ts * D * itemsize)
        grid = (pl.cdiv(S, ts), pl.cdiv(B, bb))     # batch innermost -> pe tile reused
        kernel = functools.partial(_pe_dropout_kernel_3d, p=p, training=training,
                                   full_b=B)
        return pl.pallas_call(
            kernel,
            out_shape=jax.ShapeDtypeStruct((S, B, D), x.dtype),
            grid_spec=pltpu.PrefetchScalarGridSpec(
                num_scalar_prefetch=1,
                grid=grid,
                in_specs=[
                    pl.BlockSpec((ts, bb, D), lambda i, j, seed: (i, j, 0)),
                    pl.BlockSpec((ts, 1, D), lambda i, j, seed: (i, 0, 0)),
                ],
                out_specs=pl.BlockSpec((ts, bb, D), lambda i, j, seed: (i, j, 0)),
            ),
            compiler_params=pltpu.CompilerParams(
                dimension_semantics=("parallel", "parallel"),
                vmem_limit_bytes=32 * 1024 * 1024,
            ),
        )(seed_arr, x, pe_s)

    # ---- Lane-dense 2-D path: fold (B, D) into one lane axis (free reshape)
    # so every store is an unmasked full-lane vst.
    L = B * D
    x2 = x.reshape(S, L)
    if aligned and 1 <= B <= _MAX_INKERNEL_PE_REPS:
        # PE replicated over batch *inside* the kernel via 128-aligned lane
        # concat -> no HBM materialization of a broadcast PE (saves ~2x traffic).
        pe2 = pe_s.reshape(S, D)
        pe_lanes = D
        pe_reps = B
    else:
        # Unaligned D: keep the safe pre-broadcast (done once, outside).
        pe2 = jnp.broadcast_to(pe_s, (S, B, D)).reshape(S, L)
        pe_lanes = L
        pe_reps = 1

    ts = _pick_rows(S, L * itemsize)
    grid = (pl.cdiv(S, ts),)
    kernel = functools.partial(_pe_dropout_kernel_2d, p=p, training=training,
                               pe_reps=pe_reps)
    out2 = pl.pallas_call(
        kernel,
        out_shape=jax.ShapeDtypeStruct((S, L), x.dtype),
        grid_spec=pltpu.PrefetchScalarGridSpec(
            num_scalar_prefetch=1,
            grid=grid,
            in_specs=[
                pl.BlockSpec((ts, L), lambda i, seed: (i, 0)),
                pl.BlockSpec((ts, pe_lanes), lambda i, seed: (i, 0)),
            ],
            out_specs=pl.BlockSpec((ts, L), lambda i, seed: (i, 0)),
        ),
        compiler_params=pltpu.CompilerParams(
            # Hash PRNG is tiling/core independent -> safe to shard across
            # v7x's two TensorCores; neutral on v5e/v6e.
            dimension_semantics=("parallel",),
            vmem_limit_bytes=32 * 1024 * 1024,
        ),
    )(seed_arr, x2, pe2)
    return out2.reshape(S, B, D)


# --------------------------------------------------------------------------
# Demo / self-check
# --------------------------------------------------------------------------
if __name__ == "__main__":
    d_model, max_len, seq_len, batch, p = 32, 16, 8, 2, 0.1

    key = jax.random.PRNGKey(0)
    k1, k2, k3 = jax.random.split(key, 3)

    # ---- Main demo shapes (unaligned D -> pre-broadcast lane-dense path).
    x = jax.random.normal(k1, (seq_len, batch, d_model), dtype=jnp.float32)
    pe = make_positional_encoding(d_model, max_len)
    ref = x + pe[:seq_len]

    # eval mode (dropout identity): exact match
    y_eval = jax.block_until_ready(
        positional_encoding_forward(x, pe, dropout_p=p, training=False))
    assert jnp.allclose(y_eval, ref, atol=1e-6), "eval-mode mismatch"

    # training mode: inverted dropout semantics
    y_tr = jax.block_until_ready(
        positional_encoding_forward(x, pe, dropout_p=p, training=True, seed=0))
    scaled = ref / (1.0 - p)
    ok = jnp.isclose(y_tr, scaled, atol=1e-5) | (y_tr == 0.0)
    assert bool(jnp.all(ok)), "dropout semantics mismatch"
    assert bool(jnp.any(y_tr != 0.0)), "dropout dropped everything"

    # ---- Aligned D, small batch -> in-kernel PE lane-concat path.
    d2 = 128
    pe_big = make_positional_encoding(d2, max_len)
    x2 = jax.random.normal(k2, (seq_len, 2, d2), dtype=jnp.float32)
    y2 = jax.block_until_ready(
        positional_encoding_forward(x2, pe_big, dropout_p=p, training=False))
    assert jnp.allclose(y2, x2 + pe_big[:seq_len], atol=1e-6), "concat-path mismatch"

    # ---- Aligned D, batch >= 8 -> 3-D path, with dropout.
    x3 = jax.random.normal(k3, (seq_len, 8, d2), dtype=jnp.float32)
    y3 = jax.block_until_ready(
        positional_encoding_forward(x3, pe_big, dropout_p=p, training=True, seed=3))
    scaled3 = (x3 + pe_big[:seq_len]) / (1.0 - p)
    ok3 = jnp.isclose(y3, scaled3, atol=1e-5) | (y3 == 0.0)
    assert bool(jnp.all(ok3)), "3D-path dropout semantics mismatch"
    assert bool(jnp.any(y3 != 0.0)), "3D-path dropout dropped everything"

    print("KERNEL_OK")
</pallas_src>

<mosaic_0001>
module attributes {stable_mosaic.version = 11 : i64} {
  func.func @_pe_dropout_kernel_2d(%arg0: i32, %arg1: memref<1xi32, #tpu.memory_space<smem>>, %arg2: memref<8x64xf32, #tpu.memory_space<vmem>>, %arg3: memref<8x64xf32, #tpu.memory_space<vmem>>, %arg4: memref<8x64xf32, #tpu.memory_space<vmem>>) attributes {dimension_semantics = [#tpu.dimension_semantics<parallel>], iteration_bounds = array<i64: 1>, scalar_prefetch = 1 : i64, scratch_operands = 0 : i64, tpu.core_type = #tpu.core_type<tc>, window_params = [{transform_indices = @transform_0, window_bounds = array<i64: 8, 64>}, {transform_indices = @transform_1, window_bounds = array<i64: 8, 64>}, {transform_indices = @transform_2, window_bounds = array<i64: 8, 64>}]} {
    %c0 = arith.constant 0 : index
    %c0_0 = arith.constant 0 : index
    %0 = vector.load %arg3[%c0, %c0_0] : memref<8x64xf32, #tpu.memory_space<vmem>>, vector<8x64xf32>
    %c0_1 = arith.constant 0 : index
    %c0_2 = arith.constant 0 : index
    %1 = vector.load %arg2[%c0_1, %c0_2] : memref<8x64xf32, #tpu.memory_space<vmem>>, vector<8x64xf32>
    %2 = arith.addf %1, %0 : vector<8x64xf32>
    %c0_3 = arith.constant 0 : index
    %c0_4 = arith.constant 0 : index
    %3 = vector.load %arg4[%c0_3, %c0_4] : memref<8x64xf32, #tpu.memory_space<vmem>>, vector<8x64xf32>
    tpu.vector_store %arg4[%c0_3, %c0_4], %2 {strides = array<i32>} : memref<8x64xf32, #tpu.memory_space<vmem>>, vector<8x64xf32>,
    return
  }
  func.func @transform_0(%arg0: i32, %arg1: memref<1xi32, #tpu.memory_space<smem>>) -> (i32, i32) {
    %c0_i32 = arith.constant 0 : i32
    %c0_i32_0 = arith.constant 0 : i32
    return %arg0, %c0_i32 : i32, i32
  }
  func.func @transform_1(%arg0: i32, %arg1: memref<1xi32, #tpu.memory_space<smem>>) -> (i32, i32) {
    %c0_i32 = arith.constant 0 : i32
    %c0_i32_0 = arith.constant 0 : i32
    return %arg0, %c0_i32 : i32, i32
  }
  func.func @transform_2(%arg0: i32, %arg1: memref<1xi32, #tpu.memory_space<smem>>) -> (i32, i32) {
    %c0_i32 = arith.constant 0 : i32
    %c0_i32_0 = arith.constant 0 : i32
    return %arg0, %c0_i32 : i32, i32
  }
}

</mosaic_0001>

<llo_original>
// kernel: tpu_custom_call.1
$region0: #{tpu_custom_call.1}
  #allocation0 [shape = 'u32[]', space=smem, size = 0x4, offset = 0x4, fixed_abs, tag = 'smem constant byte address 0x4 - core index']
  #allocation1 [shape = 'u32[72,128]{1,0:T(1,128)}', space=vmem, size = 0x9000, scoped, tag = 'internal scratch']
  #allocation2 [shape = 's32[1]{0}', space=sflag, size = 0x4, scoped, tag = 'scoped memory for tpu_custom_call.1']
  #allocation3 [shape = 's32[1]{0:T(128)S(6)}', space=smem, size = 0x200, scoped, tag = 'prefetched SMEM operand 0']
  %s0 = inlined_call_operand.<no memory space> [shape: s32[1], index: 0, kind: input, shape index: {}]
  %s1 = inlined_call_operand.hbm [shape: f32[8,64], index: 1, kind: input, shape index: {}]
  %s2 = inlined_call_operand.hbm [shape: f32[8,64], index: 2, kind: input, shape index: {}]
  %s3 = inlined_call_operand.hbm [shape: f32[8,64], index: 3, kind: output, shape index: {}]
  %s4 = sld [smem:[#allocation0]]
  $region26: #{tpu_custom_call.1} parent=0
    _
  %s6 = ssub.s32 1, %s4
  %s7 = scalar_select 0, %s6, %s4
  %8 = sst [smem:[#allocation3]] %s0
  $region1: #{tpu_custom_call.1} parent=0
    #allocation4 [shape = 'u8[4096]{0}', space=vmem, size = 0x1000, scoped, tag = 'input window, operand 1, single buffered']
    #allocation5 [shape = 's32[1]{0}', space=sflag, size = 0x4, scoped, tag = 'scoped memory for tpu_custom_call.1']
    #allocation6 [shape = 's32[1]{0}', space=sflag, size = 0x4, scoped, tag = 'scoped memory for tpu_custom_call.1']
    #allocation7 [shape = 'u8[4096]{0}', space=vmem, size = 0x1000, scoped, tag = 'input window, operand 2, single buffered']
    #allocation8 [shape = 's32[1]{0}', space=sflag, size = 0x4, scoped, tag = 'scoped memory for tpu_custom_call.1']
    #allocation9 [shape = 'u8[4096]{0}', space=vmem, size = 0x1000, scoped, tag = 'output window, operand 0, single buffered']
    %9 = vsyncpa [#allocation5], 0
    %10 = vsyncpa [#allocation8], 0
    %11 = vsyncpa [#allocation6], 0
    // Predicated region
    $region2: #{tpu_custom_call.1} parent=1 // pred_check
      _
    $region3: #{tpu_custom_call.1} parent=1 // pred_check_branch
      %13 = sbr.rel (0) target = $region5
    $region4: #{tpu_custom_call.1} parent=1 // pred_region
      %15 = vsyncadd [#allocation5], 0
      %s17 = sshll.u32 %s1, 4
      %s18 = int_to_ptr.hbm [resolvable:$true] %s17
      %s19 = sshll.u32 [#allocation4], 4
      %s20 = int_to_ptr.vmem [resolvable:$true] %s19
      %22 = dma.hbm_to_vmem [thread:$0]  %s18, 128, %s20, [#allocation5]
    $region5: #{tpu_custom_call.1} parent=1 // pred_fallthru
      _
    // Predicated region
    $region6: #{tpu_custom_call.1} parent=1 // pred_check
      _
    $region7: #{tpu_custom_call.1} parent=1 // pred_check_branch
      %24 = sbr.rel (0) target = $region9
    $region8: #{tpu_custom_call.1} parent=1 // pred_region
      %26 = vsyncadd [#allocation8], 0
      %s28 = sshll.u32 %s2, 4
      %s29 = int_to_ptr.hbm [resolvable:$true] %s28
      %s30 = sshll.u32 [#allocation7], 4
      %s31 = int_to_ptr.vmem [resolvable:$true] %s30
      %33 = dma.hbm_to_vmem [thread:$0]  %s29, 128, %s31, [#allocation8]
    $region9: #{tpu_custom_call.1} parent=1 // pred_fallthru
      _
    // Predicated region
    $region10: #{tpu_custom_call.1} parent=1 // pred_check
      _
    $region11: #{tpu_custom_call.1} parent=1 // pred_check_branch
      %35 = sbr.rel (0) target = $region13
    $region12: #{tpu_custom_call.1} parent=1 // pred_region
      %37 = dma.done [#allocation5], 128
    $region13: #{tpu_custom_call.1} parent=1 // pred_fallthru
      _
    // Predicated region
    $region14: #{tpu_custom_call.1} parent=1 // pred_check
      _
    $region15: #{tpu_custom_call.1} parent=1 // pred_check_branch
      %39 = sbr.rel (0) target = $region17
    $region16: #{tpu_custom_call.1} parent=1 // pred_region
      %41 = dma.done [#allocation8], 128
    $region17: #{tpu_custom_call.1} parent=1 // pred_fallthru
      _
    %v42 = vld [vmem:[#allocation7] sm:$0xff]
    %v43 = vld [vmem:[#allocation4] sm:$0xff]
    %v44 = vadd.f32 %v43, %v42
    %vm45 = vcmask 523264
    %46 = vst.msk [vmem:[#allocation9] sm:$0xff] %vm45, %v44
    // Predicated region
    $region18: #{tpu_custom_call.1} parent=1 // pred_check
      _
    $region19: #{tpu_custom_call.1} parent=1 // pred_check_branch
      %48 = sbr.rel (0) target = $region21
    $region20: #{tpu_custom_call.1} parent=1 // pred_region
      %50 = vsyncadd [#allocation6], 0
      %s52 = sshll.u32 [#allocation9], 4
      %s53 = int_to_ptr.vmem [resolvable:$true] %s52
      %s54 = sshll.u32 %s3, 4
      %s55 = int_to_ptr.hbm [resolvable:$true] %s54
      %57 = dma.vmem_to_hbm [thread:$0]  %s53, 128, %s55, [#allocation6]
    $region21: #{tpu_custom_call.1} parent=1 // pred_fallthru
      _
    // Predicated region
    $region22: #{tpu_custom_call.1} parent=1 // pred_check
      _
    $region23: #{tpu_custom_call.1} parent=1 // pred_check_branch
      %59 = sbr.rel (0) target = $region25
    $region24: #{tpu_custom_call.1} parent=1 // pred_region
      %61 = dma.done [#allocation6], 128
    $region25: #{tpu_custom_call.1} parent=1 // pred_fallthru
      _
    %62 = vsyncpa [#allocation5], 1
    %63 = vsyncpa [#allocation8], 1
    %64 = vsyncpa [#allocation6], 1

</llo_original>
